<compile_context>
chip_gen: v7x
topology: tpu7x:2x2x1
jax: 0.10.0
libtpu: 0.0.40
codegen_flags: <defaults>
</compile_context>

<pallas_src>
import functools

import jax
import jax.numpy as jnp
from jax.experimental import pallas as pl
from jax.experimental.pallas import tpu as pltpu


# -----------------------------------------------------------------------------
# Kernel: streaming pixel-wise cross-entropy with ignore_index.
# Grid = (num_shards [parallel], tiles_per_shard [arbitrary / reduction]).
# -----------------------------------------------------------------------------
def _ce_kernel(logits_ref, labels_ref, sum_ref, cnt_ref, acc_sum, acc_cnt, *,
               ignore_index):
    t = pl.program_id(1)
    last_t = pl.num_programs(1) - 1

    @pl.when(t == 0)
    def _init():
        acc_sum[...] = jnp.zeros_like(acc_sum)
        acc_cnt[...] = jnp.zeros_like(acc_cnt)
        sum_ref[...] = jnp.zeros_like(sum_ref)
        cnt_ref[...] = jnp.zeros_like(cnt_ref)

    x = logits_ref[...].astype(jnp.float32)        # [B, C, T] (in-register upcast)
    lbl = labels_ref[...]                          # [B, T] int32

    # Numerically stable log-sum-exp over the class (sublane) axis.
    m = jnp.max(x, axis=1)                                          # [B, T]
    lse = m + jnp.log(jnp.sum(jnp.exp(x - m[:, None, :]), axis=1))  # [B, T]

    # Target-class logit: tiny (1, C, 1) iota + broadcast compare + where-sum
    # (no full-size f32 one-hot, no extra multiply).
    cls = jax.lax.broadcasted_iota(jnp.int32, (1, x.shape[1], 1), 1)
    tgt = jnp.sum(jnp.where(cls == lbl[:, None, :], x, 0.0), axis=1)  # [B, T]

    valid = lbl != ignore_index                                     # [B, T] bool
    nll = jnp.where(valid, lse - tgt, 0.0)                          # [B, T]

    # Elementwise (blocked) accumulation -- no cross-lane reduce in steady state.
    acc_sum[...] += nll
    acc_cnt[...] += valid.astype(jnp.float32)

    @pl.when(t == last_t)
    def _finalize():
        sum_ref[...] = jnp.broadcast_to(jnp.sum(acc_sum[...]), sum_ref.shape)
        cnt_ref[...] = jnp.broadcast_to(jnp.sum(acc_cnt[...]), cnt_ref.shape)


# -----------------------------------------------------------------------------
# Tile planning from a generation-aware VMEM budget.
# -----------------------------------------------------------------------------
def _vmem_capacity_bytes():
    try:
        cap = getattr(pltpu.get_tpu_info(), "vmem_capacity_bytes", None)
        if cap:
            return int(cap)
    except Exception:
        pass
    return 64 * 1024 * 1024  # conservative fallback (v7x per-TC physical VMEM)


def _plan_tiles(hw, b, c, itemsize, num_shards, max_tile_hw):
    vmem_cap = _vmem_capacity_bytes()
    budget = min(vmem_cap // 4, 48 * 1024 * 1024)
    # Per-pixel working set: double-buffered native-dtype logits + labels blocks,
    # ~4 full-size f32 intermediates, and the two f32 scratch accumulators.
    bytes_per_px = 2 * b * (c * itemsize + 4) + 4 * b * c * 4 + 2 * b * 4
    tile = budget // bytes_per_px
    tile = max(128, min(tile, max_tile_hw))
    tile = (tile // 128) * 128
    # Never larger than one shard's share of the pixels (rounded up to 128).
    per_shard = -(-hw // num_shards)
    min_cover = max(128, -(-per_shard // 128) * 128)
    tile = min(tile, min_cover)
    tiles_per_shard = -(-hw // (num_shards * tile))
    hw_padded = num_shards * tiles_per_shard * tile
    return tile, tiles_per_shard, hw_padded, vmem_cap


# -----------------------------------------------------------------------------
# Wrapper
# -----------------------------------------------------------------------------
def seg_ce_loss_pallas(logits_nchw, labelmap, *, ignore_index=-1,
                       num_shards=2, max_tile_hw=32768):
    B, C, H, W = logits_nchw.shape
    HW = H * W
    logits = logits_nchw.reshape(B, C, HW)              # free view of NCHW
    labels = labelmap.reshape(B, HW).astype(jnp.int32)

    itemsize = jnp.dtype(logits.dtype).itemsize
    tile_hw, tiles_per_shard, hw_padded, vmem_cap = _plan_tiles(
        HW, B, C, itemsize, num_shards, max_tile_hw)

    if hw_padded != HW:
        # TODO(synk): replace wrapper-side padding with an in-kernel tail-lane
        # mask to avoid the extra HBM copy when HW is not tile-aligned.
        pad = hw_padded - HW
        logits = jnp.pad(logits, ((0, 0), (0, 0), (0, pad)))
        labels = jnp.pad(labels, ((0, 0), (0, pad)), constant_values=ignore_index)

    tps = tiles_per_shard
    grid = (num_shards, tiles_per_shard)

    cost = pl.CostEstimate(
        flops=int(7 * B * C * hw_padded),
        transcendentals=int(B * C * hw_padded + B * hw_padded),
        bytes_accessed=int(B * C * hw_padded * itemsize + B * hw_padded * 4),
    )

    s, n = pl.pallas_call(
        functools.partial(_ce_kernel, ignore_index=ignore_index),
        grid=grid,
        in_specs=[
            pl.BlockSpec((B, C, tile_hw), lambda c, t: (0, 0, c * tps + t)),
            pl.BlockSpec((B, tile_hw), lambda c, t: (0, c * tps + t)),
        ],
        out_specs=(
            pl.BlockSpec((1, 1, 1), lambda c, t: (c, 0, 0)),
            pl.BlockSpec((1, 1, 1), lambda c, t: (c, 0, 0)),
        ),
        out_shape=(
            jax.ShapeDtypeStruct((num_shards, 1, 1), jnp.float32),
            jax.ShapeDtypeStruct((num_shards, 1, 1), jnp.float32),
        ),
        scratch_shapes=[
            pltpu.VMEM((B, tile_hw), jnp.float32),   # running NLL per element
            pltpu.VMEM((B, tile_hw), jnp.float32),   # running valid count
        ],
        compiler_params=pltpu.CompilerParams(
            dimension_semantics=("parallel", "arbitrary"),
            vmem_limit_bytes=int(min(vmem_cap * 3 // 4, 512 * 1024 * 1024)),
        ),
        cost_estimate=cost,
    )(logits, labels)

    # Matches torch CrossEntropyLoss(ignore_index=-1, reduction='mean'):
    # mean over valid pixels; NaN (0/0) if every pixel is ignored.
    return jnp.sum(s) / jnp.sum(n)


# Module-equivalent wrapper (SegCELoss.forward).
def seg_ce_loss(out_dict, data_dict, *, ignore_index=-1, **kwargs):
    loss = seg_ce_loss_pallas(out_dict["out"], data_dict["labelmap"],
                              ignore_index=ignore_index, **kwargs)
    return dict(loss=loss)


# Pure-JAX reference for correctness check.
def _ref_ce(logits_nchw, labelmap, ignore_index=-1):
    B, C, H, W = logits_nchw.shape
    x = jnp.transpose(logits_nchw, (0, 2, 3, 1)).reshape(-1, C).astype(jnp.float32)
    y = labelmap.reshape(-1)
    valid = y != ignore_index
    y_safe = jnp.where(valid, y, 0)
    logp = jax.nn.log_softmax(x, axis=-1)
    nll = -jnp.take_along_axis(logp, y_safe[:, None], axis=-1)[:, 0]
    nll = jnp.where(valid, nll, 0.0)
    return jnp.sum(nll) / jnp.sum(valid.astype(jnp.float32))


if __name__ == "__main__":
    key = jax.random.PRNGKey(0)
    k1, k2, k3, k4 = jax.random.split(key, 4)

    # Case 1: tile-aligned spatial size; small max_tile forces multi-tile
    # accumulation under the 2-shard "parallel" outer axis (grid = (2, 4)).
    B, C, H, W = 2, 8, 32, 32
    out1 = jax.random.normal(k1, (B, C, H, W), dtype=jnp.float32)
    lbl1 = jax.random.randint(k2, (B, H, W), 0, C, dtype=jnp.int32)
    lbl1 = lbl1.at[:, 0, :3].set(-1)            # exercise ignore_index

    res1 = seg_ce_loss({"out": out1}, {"labelmap": lbl1}, max_tile_hw=128)
    loss1 = jax.block_until_ready(res1["loss"])
    ref1 = _ref_ce(out1, lbl1)
    assert jnp.isfinite(loss1), "non-finite loss (case 1)"
    assert jnp.allclose(loss1, ref1, rtol=1e-5, atol=1e-5), (float(loss1), float(ref1))

    # Case 2: H*W = 225 (not a multiple of 128) exercises the wrapper padding
    # path (ignore-labelled, zero-logit tail pixels).
    H2, W2 = 15, 15
    out2 = jax.random.normal(k3, (B, C, H2, W2), dtype=jnp.float32)
    lbl2 = jax.random.randint(k4, (B, H2, W2), 0, C, dtype=jnp.int32)
    lbl2 = lbl2.at[0, 0, 0].set(-1)

    res2 = seg_ce_loss({"out": out2}, {"labelmap": lbl2})
    loss2 = jax.block_until_ready(res2["loss"])
    ref2 = _ref_ce(out2, lbl2)
    assert jnp.isfinite(loss2), "non-finite loss (case 2)"
    assert jnp.allclose(loss2, ref2, rtol=1e-5, atol=1e-5), (float(loss2), float(ref2))

    print("KERNEL_OK")
</pallas_src>

<mosaic_0001>
module attributes {stable_mosaic.version = 11 : i64} {
  func.func @_ce_kernel(%arg0: i32, %arg1: i32, %arg2: memref<2x8x128xf32, #tpu.memory_space<vmem>>, %arg3: memref<2x128xi32, #tpu.memory_space<vmem>>, %arg4: memref<1x1x1xf32, #tpu.memory_space<vmem>>, %arg5: memref<1x1x1xf32, #tpu.memory_space<vmem>>, %arg6: memref<2x128xf32, #tpu.memory_space<vmem>>, %arg7: memref<2x128xf32, #tpu.memory_space<vmem>>) attributes {dimension_semantics = [#tpu.dimension_semantics<parallel>, #tpu.dimension_semantics<arbitrary>], iteration_bounds = array<i64: 2, 4>, scalar_prefetch = 0 : i64, scratch_operands = 2 : i64, tpu.core_type = #tpu.core_type<tc>, window_params = [{transform_indices = @transform_0, window_bounds = array<i64: 2, 8, 128>}, {transform_indices = @transform_1, window_bounds = array<i64: 2, 128>}, {transform_indices = @transform_2, window_bounds = array<i64: 1, 1, 1>}, {transform_indices = @transform_3, window_bounds = array<i64: 1, 1, 1>}]} {
    %c0_i32 = arith.constant 0 : i32
    %0 = arith.cmpi eq, %arg1, %c0_i32 : i32
    %1 = arith.extui %0 : i1 to i32
    %c0_i32_0 = arith.constant 0 : i32
    %2 = arith.cmpi ne, %1, %c0_i32_0 : i32
    scf.if %2 {
      %cst_18 = arith.constant 0.000000e+00 : f32
      %37 = vector.broadcast %cst_18 : f32 to vector<2x128xf32>
      %c0_19 = arith.constant 0 : index
      %c0_20 = arith.constant 0 : index
      %38 = vector.load %arg6[%c0_19, %c0_20] : memref<2x128xf32, #tpu.memory_space<vmem>>, vector<2x128xf32>
      tpu.vector_store %arg6[%c0_19, %c0_20], %37 {strides = array<i32>} : memref<2x128xf32, #tpu.memory_space<vmem>>, vector<2x128xf32>,
      %cst_21 = arith.constant 0.000000e+00 : f32
      %39 = vector.broadcast %cst_21 : f32 to vector<2x128xf32>
      %c0_22 = arith.constant 0 : index
      %c0_23 = arith.constant 0 : index
      %40 = vector.load %arg7[%c0_22, %c0_23] : memref<2x128xf32, #tpu.memory_space<vmem>>, vector<2x128xf32>
      tpu.vector_store %arg7[%c0_22, %c0_23], %39 {strides = array<i32>} : memref<2x128xf32, #tpu.memory_space<vmem>>, vector<2x128xf32>,
      %cst_24 = arith.constant 0.000000e+00 : f32
      %41 = vector.broadcast %cst_24 : f32 to vector<1x1x1xf32>
      %c0_25 = arith.constant 0 : index
      %c0_26 = arith.constant 0 : index
      %c0_27 = arith.constant 0 : index
      %42 = vector.load %arg4[%c0_25, %c0_26, %c0_27] : memref<1x1x1xf32, #tpu.memory_space<vmem>>, vector<1x1x1xf32>
      tpu.vector_store %arg4[%c0_25, %c0_26, %c0_27], %41 {strides = array<i32>} : memref<1x1x1xf32, #tpu.memory_space<vmem>>, vector<1x1x1xf32>,
      %cst_28 = arith.constant 0.000000e+00 : f32
      %43 = vector.broadcast %cst_28 : f32 to vector<1x1x1xf32>
      %c0_29 = arith.constant 0 : index
      %c0_30 = arith.constant 0 : index
      %c0_31 = arith.constant 0 : index
      %44 = vector.load %arg5[%c0_29, %c0_30, %c0_31] : memref<1x1x1xf32, #tpu.memory_space<vmem>>, vector<1x1x1xf32>
      tpu.vector_store %arg5[%c0_29, %c0_30, %c0_31], %43 {strides = array<i32>} : memref<1x1x1xf32, #tpu.memory_space<vmem>>, vector<1x1x1xf32>,
    } else {
    }
    %c0 = arith.constant 0 : index
    %c0_1 = arith.constant 0 : index
    %c0_2 = arith.constant 0 : index
    %3 = vector.load %arg2[%c0, %c0_1, %c0_2] : memref<2x8x128xf32, #tpu.memory_space<vmem>>, vector<2x8x128xf32>
    %c0_3 = arith.constant 0 : index
    %c0_4 = arith.constant 0 : index
    %4 = vector.load %arg3[%c0_3, %c0_4] : memref<2x128xi32, #tpu.memory_space<vmem>>, vector<2x128xi32>
    %cst = arith.constant dense<0xFF800000> : vector<2x128xf32>
    %5 = vector.multi_reduction <maximumf>, %3, %cst [1] : vector<2x8x128xf32> to vector<2x128xf32>
    %6 = vector.shape_cast %5 : vector<2x128xf32> to vector<2x1x128xf32>
    %7 = vector.broadcast %6 : vector<2x1x128xf32> to vector<2x8x128xf32>
    %8 = arith.subf %3, %7 : vector<2x8x128xf32>
    %9 = math.exp %8 : vector<2x8x128xf32>
    %cst_5 = arith.constant dense<0.000000e+00> : vector<2x128xf32>
    %10 = vector.multi_reduction <add>, %9, %cst_5 [1] : vector<2x8x128xf32> to vector<2x128xf32>
    %11 = math.log %10 : vector<2x128xf32>
    %12 = arith.addf %5, %11 : vector<2x128xf32>
    %13 = tpu.iota {dimensions = array<i32: 1>} : vector<1x8x1xi32>
    %14 = vector.shape_cast %4 : vector<2x128xi32> to vector<2x1x128xi32>
    %15 = vector.broadcast %13 : vector<1x8x1xi32> to vector<2x8x128xi32>
    %16 = vector.broadcast %14 : vector<2x1x128xi32> to vector<2x8x128xi32>
    %17 = arith.cmpi eq, %15, %16 : vector<2x8x128xi32>
    %cst_6 = arith.constant 0.000000e+00 : f32
    %18 = vector.broadcast %cst_6 : f32 to vector<2x8x128xf32>
    %19 = arith.select %17, %3, %18 : vector<2x8x128xi1>, vector<2x8x128xf32>
    %cst_7 = arith.constant dense<0.000000e+00> : vector<2x128xf32>
    %20 = vector.multi_reduction <add>, %19, %cst_7 [1] : vector<2x8x128xf32> to vector<2x128xf32>
    %c-1_i32 = arith.constant -1 : i32
    %21 = vector.broadcast %c-1_i32 : i32 to vector<2x128xi32>
    %22 = arith.cmpi ne, %4, %21 : vector<2x128xi32>
    %23 = arith.subf %12, %20 : vector<2x128xf32>
    %cst_8 = arith.constant 0.000000e+00 : f32
    %24 = vector.broadcast %cst_8 : f32 to vector<2x128xf32>
    %25 = arith.select %22, %23, %24 : vector<2x128xi1>, vector<2x128xf32>
    %c0_9 = arith.constant 0 : index
    %c0_10 = arith.constant 0 : index
    %26 = vector.load %arg6[%c0_9, %c0_10] : memref<2x128xf32, #tpu.memory_space<vmem>>, vector<2x128xf32>
    %27 = arith.addf %26, %25 : vector<2x128xf32>
    %c0_11 = arith.constant 0 : index
    %c0_12 = arith.constant 0 : index
    %28 = vector.load %arg6[%c0_11, %c0_12] : memref<2x128xf32, #tpu.memory_space<vmem>>, vector<2x128xf32>
    tpu.vector_store %arg6[%c0_11, %c0_12], %27 {strides = array<i32>} : memref<2x128xf32, #tpu.memory_space<vmem>>, vector<2x128xf32>,
    %c0_13 = arith.constant 0 : index
    %c0_14 = arith.constant 0 : index
    %29 = vector.load %arg7[%c0_13, %c0_14] : memref<2x128xf32, #tpu.memory_space<vmem>>, vector<2x128xf32>
    %30 = arith.extui %22 : vector<2x128xi1> to vector<2x128xi32>
    %31 = arith.sitofp %30 : vector<2x128xi32> to vector<2x128xf32>
    %32 = arith.addf %29, %31 : vector<2x128xf32>
    %c0_15 = arith.constant 0 : index
    %c0_16 = arith.constant 0 : index
    %33 = vector.load %arg7[%c0_15, %c0_16] : memref<2x128xf32, #tpu.memory_space<vmem>>, vector<2x128xf32>
    tpu.vector_store %arg7[%c0_15, %c0_16], %32 {strides = array<i32>} : memref<2x128xf32, #tpu.memory_space<vmem>>, vector<2x128xf32>,
    %c3_i32 = arith.constant 3 : i32
    %34 = arith.cmpi eq, %arg1, %c3_i32 : i32
    %35 = arith.extui %34 : i1 to i32
    %c0_i32_17 = arith.constant 0 : i32
    %36 = arith.cmpi ne, %35, %c0_i32_17 : i32
    scf.if %36 {
      %c0_18 = arith.constant 0 : index
      %c0_19 = arith.constant 0 : index
      %37 = vector.load %arg6[%c0_18, %c0_19] : memref<2x128xf32, #tpu.memory_space<vmem>>, vector<2x128xf32>
      %38 = vector.shape_cast %37 : vector<2x128xf32> to vector<1x2x128xf32>
      %cst_20 = arith.constant dense<0.000000e+00> : vector<1xf32>
      %39 = vector.multi_reduction <add>, %38, %cst_20 [1, 2] : vector<1x2x128xf32> to vector<1xf32>
      %40 = vector.shape_cast %39 : vector<1xf32> to vector<1x1x1xf32>
      %41 = vector.extract %40[0, 0, 0] : f32 from vector<1x1x1xf32>
      %42 = vector.broadcast %41 : f32 to vector<1x1x1xf32>
      %c0_21 = arith.constant 0 : index
      %c0_22 = arith.constant 0 : index
      %c0_23 = arith.constant 0 : index
      %43 = vector.load %arg4[%c0_21, %c0_22, %c0_23] : memref<1x1x1xf32, #tpu.memory_space<vmem>>, vector<1x1x1xf32>
      tpu.vector_store %arg4[%c0_21, %c0_22, %c0_23], %42 {strides = array<i32>} : memref<1x1x1xf32, #tpu.memory_space<vmem>>, vector<1x1x1xf32>,
      %c0_24 = arith.constant 0 : index
      %c0_25 = arith.constant 0 : index
      %44 = vector.load %arg7[%c0_24, %c0_25] : memref<2x128xf32, #tpu.memory_space<vmem>>, vector<2x128xf32>
      %45 = vector.shape_cast %44 : vector<2x128xf32> to vector<1x2x128xf32>
      %cst_26 = arith.constant dense<0.000000e+00> : vector<1xf32>
      %46 = vector.multi_reduction <add>, %45, %cst_26 [1, 2] : vector<1x2x128xf32> to vector<1xf32>
      %47 = vector.shape_cast %46 : vector<1xf32> to vector<1x1x1xf32>
      %48 = vector.extract %47[0, 0, 0] : f32 from vector<1x1x1xf32>
      %49 = vector.broadcast %48 : f32 to vector<1x1x1xf32>
      %c0_27 = arith.constant 0 : index
      %c0_28 = arith.constant 0 : index
      %c0_29 = arith.constant 0 : index
      %50 = vector.load %arg5[%c0_27, %c0_28, %c0_29] : memref<1x1x1xf32, #tpu.memory_space<vmem>>, vector<1x1x1xf32>
      tpu.vector_store %arg5[%c0_27, %c0_28, %c0_29], %49 {strides = array<i32>} : memref<1x1x1xf32, #tpu.memory_space<vmem>>, vector<1x1x1xf32>,
    } else {
    }
    return
  }
  func.func @transform_0(%arg0: i32, %arg1: i32) -> (i32, i32, i32) {
    %c4_i32 = arith.constant 4 : i32
    %0 = arith.muli %arg0, %c4_i32 : i32
    %1 = arith.addi %0, %arg1 : i32
    %c0_i32 = arith.constant 0 : i32
    %c0_i32_0 = arith.constant 0 : i32
    %c0_i32_1 = arith.constant 0 : i32
    return %c0_i32, %c0_i32_0, %1 : i32, i32, i32
  }
  func.func @transform_1(%arg0: i32, %arg1: i32) -> (i32, i32) {
    %c4_i32 = arith.constant 4 : i32
    %0 = arith.muli %arg0, %c4_i32 : i32
    %1 = arith.addi %0, %arg1 : i32
    %c0_i32 = arith.constant 0 : i32
    %c0_i32_0 = arith.constant 0 : i32
    return %c0_i32, %1 : i32, i32
  }
  func.func @transform_2(%arg0: i32, %arg1: i32) -> (i32, i32, i32) {
    %c0_i32 = arith.constant 0 : i32
    %c0_i32_0 = arith.constant 0 : i32
    %c0_i32_1 = arith.constant 0 : i32
    return %arg0, %c0_i32, %c0_i32_0 : i32, i32, i32
  }
  func.func @transform_3(%arg0: i32, %arg1: i32) -> (i32, i32, i32) {
    %c0_i32 = arith.constant 0 : i32
    %c0_i32_0 = arith.constant 0 : i32
    %c0_i32_1 = arith.constant 0 : i32
    return %arg0, %c0_i32, %c0_i32_0 : i32, i32, i32
  }
}

</mosaic_0001>

<llo_original>
// kernel: tpu_custom_call.1
$region0: #{tpu_custom_call.1}
  #allocation0 [shape = 'u32[]', space=smem, size = 0x4, offset = 0x4, fixed_abs, tag = 'smem constant byte address 0x4 - core index']
  #allocation1 [shape = 'u32[144,128]{1,0:T(1,128)}', space=vmem, size = 0x12000, scoped, tag = 'internal scratch']
  #allocation2 [shape = 'f32[2,128]{1,0:T(2,128)}', space=vmem, size = 0x400, scoped, tag = 'scratch operand']
  #allocation3 [shape = 'f32[2,128]{1,0:T(2,128)}', space=vmem, size = 0x400, scoped, tag = 'scratch operand']
  %s0 = inlined_call_operand.hbm [shape: f32[2,8,1024], index: 0, kind: input, shape index: {}]
  %s1 = inlined_call_operand.hbm [shape: s32[2,1024], index: 1, kind: input, shape index: {}]
  %s2 = inlined_call_operand.vmem [shape: f32[2,1,1], index: 2, kind: output, shape index: {0}]
  %s3 = inlined_call_operand.vmem [shape: f32[2,1,1], index: 3, kind: output, shape index: {1}]
  %4 = xla_tuple %s2, %s3
  %s5 = sld [smem:[#allocation0]]
  $region65: #{tpu_custom_call.1} parent=0
    _
  %s7 = ssub.s32 1, %s5
  %s8 = scalar_select 0, %s7, %s5
  $region1: #{tpu_custom_call.1} parent=0
    #allocation4 [shape = 'u8[16384]{0}', space=vmem, size = 0x4000, scoped, tag = 'input window, operand 0']
    #allocation5 [shape = 's32[2]{0}', space=sflag, size = 0x8, scoped, tag = 'scoped memory for tpu_custom_call.1']
    #allocation6 [shape = 'u8[2048]{0}', space=vmem, size = 0x800, scoped, tag = 'input window, operand 1']
    #allocation7 [shape = 's32[2]{0}', space=sflag, size = 0x8, scoped, tag = 'scoped memory for tpu_custom_call.1']
    %9 = vsyncpa [#allocation5], 0
    %s10 = scalar_lea.sflag [#allocation5], 1
    %11 = vsyncpa %s10, 0
    %12 = vsyncpa [#allocation7], 0
    %s13 = scalar_lea.sflag [#allocation7], 1
    %14 = vsyncpa %s13, 0
    loop: start=0, step=1, limit=10
    $region2: #{tpu_custom_call.1} parent=1 // loop_pre_header
      _
    $region3: #{tpu_custom_call.1} parent=1 // loop_header
      %s16 = sphi 0, %s20
      %p17 = scmp.ge.s32.totalorder %s16, 10
      %s23 = sphi 0, %s35
      %s24 = sphi 0, %s31
      %s25 = sphi 0, %s23
      %s26 = sphi 0, %s24
      %s27 = sphi 0, %s25
      %s28 = sphi 0, %s26
      %s42 = sphi 0, %s44
      %s45 = sphi 0, %s42
      %s46 = sphi 0, %s45
      %s62 = sphi 0, %s46
      %s72 = sphi 0, %s74
      %s75 = sphi 0, %s72
      %s76 = sphi 0, %s75
      %s92 = sphi 0, %s76
      %s98 = sphi 0, %s100
      %s101 = sphi 0, %s98
      %s102 = sphi 0, %s101
      %s118 = sphi 0, %s102
      %s124 = sphi 0, %s126
      %s127 = sphi 0, %s124
      %s128 = sphi 0, %s127
      %s144 = sphi 0, %s128
    $region4: #{tpu_custom_call.1} parent=1 // loop_header_branch
      %19 = sbr.rel (%p17) target = $region8
    $region5: #{tpu_custom_call.1} parent=1 // loop_body
      %s21 = ssub.s32 %s16, 1
      %s22 = ssub.s32 %s16, 2
      %s29 = sadd.s32 1, %s24
      %p30 = scmp.ge.s32.totalorder %s29, 4
      %s31 = scalar_select %p30, 0, %s29
      %s32 = sadd.s32 1, %s23
      %s33 = scalar_select %p30, %s32, %s23
      %p34 = scmp.ge.s32.totalorder %s33, 2
      %s35 = scalar_select %p34, 0, %s33
      %s36 = smul.u32 %s23, 4
      %s37 = sadd.s32 %s36, %s24
      %s38 = smul.u32 %s35, 4
      %s39 = sadd.s32 %s38, %s31
      %s40 = ssub.s32 %s37, %s39
      %p41 = scmp.eq.s32.totalorder %s40, 0
      %s43 = sadd.s32 %s42, 1
      %s44 = scalar_select %p41, %s42, %s43
      %p47 = pneg %p41
      %p48 = scmp.eq.s32.totalorder %s16, 7
      %p49 = por %p47, %p48
      %p50 = scmp.ne.s32.totalorder %s42, %s45
      %p51 = scmp.eq.s32.totalorder %s16, 0
      %p52 = por %p50, %p51
      %p53 = scmp.ne.s32.totalorder %s42, %s45
      %p54 = scmp.eq.s32.totalorder %s21, 7
      %p55 = por %p53, %p54
      %p56 = scmp.ne.s32.totalorder %s45, %s46
      %p57 = scmp.eq.s32.totalorder %s21, 0
      %p58 = por %p56, %p57
      %p59 = scmp.ne.s32.totalorder %s45, %s46
      %p60 = scmp.eq.s32.totalorder %s22, 7
      %p61 = por %p59, %p60
      %p63 = scmp.ne.s32.totalorder %s46, %s62
      %p64 = scmp.eq.s32.totalorder %s22, 0
      %p65 = por %p63, %p64
      %s66 = smul.u32 %s23, 4
      %s67 = sadd.s32 %s66, %s24
      %s68 = smul.u32 %s35, 4
      %s69 = sadd.s32 %s68, %s31
      %s70 = ssub.s32 %s67, %s69
      %p71 = scmp.eq.s32.totalorder %s70, 0
      %s73 = sadd.s32 %s72, 1
      %s74 = scalar_select %p71, %s72, %s73
      %p77 = pneg %p71
      %p78 = scmp.eq.s32.totalorder %s16, 7
      %p79 = por %p77, %p78
      %p80 = scmp.ne.s32.totalorder %s72, %s75
      %p81 = scmp.eq.s32.totalorder %s16, 0
      %p82 = por %p80, %p81
      %p83 = scmp.ne.s32.totalorder %s72, %s75
      %p84 = scmp.eq.s32.totalorder %s21, 7
      %p85 = por %p83, %p84
      %p86 = scmp.ne.s32.totalorder %s75, %s76
      %p87 = scmp.eq.s32.totalorder %s21, 0
      %p88 = por %p86, %p87
      %p89 = scmp.ne.s32.totalorder %s75, %s76
      %p90 = scmp.eq.s32.totalorder %s22, 7
      %p91 = por %p89, %p90
      %p93 = scmp.ne.s32.totalorder %s76, %s92
      %p94 = scmp.eq.s32.totalorder %s22, 0
      %p95 = por %p93, %p94
      %s96 = ssub.s32 %s23, %s35
      %p97 = scmp.eq.s32.totalorder %s96, 0
      %s99 = sadd.s32 %s98, 1
      %s100 = scalar_select %p97, %s98, %s99
      %p103 = pneg %p97
      %p104 = scmp.eq.s32.totalorder %s16, 7
      %p105 = por %p103, %p104
      %p106 = scmp.ne.s32.totalorder %s98, %s101
      %p107 = scmp.eq.s32.totalorder %s16, 0
      %p108 = por %p106, %p107
      %p109 = scmp.ne.s32.totalorder %s98, %s101
      %p110 = scmp.eq.s32.totalorder %s21, 7
      %p111 = por %p109, %p110
      %p112 = scmp.ne.s32.totalorder %s101, %s102
      %p113 = scmp.eq.s32.totalorder %s21, 0
      %p114 = por %p112, %p113
      %p115 = scmp.ne.s32.totalorder %s101, %s102
      %p116 = scmp.eq.s32.totalorder %s22, 7
      %p117 = por %p115, %p116
      %p119 = scmp.ne.s32.totalorder %s102, %s118
      %p120 = scmp.eq.s32.totalorder %s22, 0
      %p121 = por %p119, %p120
      %s122 = ssub.s32 %s23, %s35
      %p123 = scmp.eq.s32.totalorder %s122, 0
      %s125 = sadd.s32 %s124, 1
      %s126 = scalar_select %p123, %s124, %s125
      %p129 = pneg %p123
      %p130 = scmp.eq.s32.totalorder %s16, 7
      %p131 = por %p129, %p130
      %p132 = scmp.ne.s32.totalorder %s124, %s127
      %p133 = scmp.eq.s32.totalorder %s16, 0
      %p134 = por %p132, %p133
      %p135 = scmp.ne.s32.totalorder %s124, %s127
      %p136 = scmp.eq.s32.totalorder %s21, 7
      %p137 = por %p135, %p136
      %p138 = scmp.ne.s32.totalorder %s127, %s128
      %p139 = scmp.eq.s32.totalorder %s21, 0
      %p140 = por %p138, %p139
      %p141 = scmp.ne.s32.totalorder %s127, %s128
      %p142 = scmp.eq.s32.totalorder %s22, 7
      %p143 = por %p141, %p142
      %p145 = scmp.ne.s32.totalorder %s128, %s144
      %p146 = scmp.eq.s32.totalorder %s22, 0
      %p147 = por %p145, %p146
      %p148 = scmp.le.s32.totalorder 1, %s16
      %p149 = scmp.lt.s32.totalorder %s16, 9
      %p150 = pnand %p148, %p149
      %p151 = pneg %p150
      // Predicated region
      $region9: #{tpu_custom_call.1} parent=5 // pred_check
        _
      $region10: #{tpu_custom_call.1} parent=5 // pred_check_branch
        %153 = sbr.rel (%p150) target = $region12
      $region11: #{tpu_custom_call.1} parent=5 // pred_region
        %s154 = ssub.s32 %s16, 1
      $region12: #{tpu_custom_call.1} parent=5 // pred_fallthru
        _
      %p155 = scmp.lt.s32.totalorder %s16, 8
      // Predicated region
      $region13: #{tpu_custom_call.1} parent=5 // pred_check
        %p156 = pneg %p155
      $region14: #{tpu_custom_call.1} parent=5 // pred_check_branch
        %158 = sbr.rel (%p156) target = $region16
      $region15: #{tpu_custom_call.1} parent=5 // pred_region
        // Predicated region
        $region17: #{tpu_custom_call.1} parent=15 // pred_check
          %p159 = pneg %p52
        $region18: #{tpu_custom_call.1} parent=15 // pred_check_branch
          %161 = sbr.rel (%p159) target = $region20
        $region19: #{tpu_custom_call.1} parent=15 // pred_region
          %s162 = sand.u32 %s42, 1
          %s163 = scalar_lea.sflag [#allocation5], %s162
          %s164 = sand.u32 %s42, 1
          %s165 = smul.addr %s164, 16
          %s166 = scalar_lea.vmem [#allocation4], %s165
          %s167 = smul.u32 %s23, 4
          %s168 = sadd.s32 %s167, %s24
          %s170 = ssub.s32 256, 256
          %171 = vsyncadd %s163, %s170
          %s172 = smul.addr %s168, 128
          %s173 = scalar_lea.hbm %s0, %s172
          %s174 = sshll.u32 %s166, 4
          %s175 = int_to_ptr.vmem [resolvable:$true] %s174
          %180 = dma.hbm_to_vmem [thread:$0]  %s173, 256, %s175, %s163, 1024, 128, 8
        $region20: #{tpu_custom_call.1} parent=15 // pred_fallthru
          _
        // Predicated region
        $region21: #{tpu_custom_call.1} parent=15 // pred_check
          %p181 = pneg %p82
        $region22: #{tpu_custom_call.1} parent=15 // pred_check_branch
          %183 = sbr.rel (%p181) target = $region24
        $region23: #{tpu_custom_call.1} parent=15 // pred_region
          %s184 = sand.u32 %s72, 1
          %s185 = scalar_lea.sflag [#allocation7], %s184
          %s186 = sand.u32 %s72, 1
          %s187 = smul.addr %s186, 2
          %s188 = scalar_lea.vmem [#allocation6], %s187
          %s189 = smul.u32 %s23, 4
          %s190 = sadd.s32 %s189, %s24
          %s192 = ssub.s32 32, 32
          %193 = vsyncadd %s185, %s192
          %s194 = smul.addr %s190, 32
          %s195 = scalar_lea.hbm %s1, %s194
          %s197 = sshll.u32 %s188, 4
          %s198 = int_to_ptr.vmem [resolvable:$true] %s197
          %200 = dma.hbm_to_vmem [thread:$0]  %s195, 32, %s198, %s185
        $region24: #{tpu_custom_call.1} parent=15 // pred_fallthru
          _
      $region16: #{tpu_custom_call.1} parent=5 // pred_fallthru
        _
      %p201 = scmp.le.s32.totalorder 1, %s16
      %p202 = scmp.lt.s32.totalorder %s16, 9
      %p203 = pnand %p201, %p202
      %p204 = pneg %p203
      // Predicated region
      $region25: #{tpu_custom_call.1} parent=5 // pred_check
        _
      $region26: #{tpu_custom_call.1} parent=5 // pred_check_branch
        %206 = sbr.rel (%p203) target = $region28
      $region27: #{tpu_custom_call.1} parent=5 // pred_region
        %s207 = ssub.s32 %s16, 1
        %s208 = sand.u32 %s45, 1
        %s209 = scalar_lea.sflag [#allocation5], %s208
        %s210 = sand.u32 %s45, 1
        %s211 = smul.addr %s210, 16
        %s212 = scalar_lea.vmem [#allocation4], %s211
        // Predicated region
        $region29: #{tpu_custom_call.1} parent=27 // pred_check
          %p213 = pneg %p58
        $region30: #{tpu_custom_call.1} parent=27 // pred_check_branch
          %215 = sbr.rel (%p213) target = $region32
        $region31: #{tpu_custom_call.1} parent=27 // pred_region
          %216 = dma.done %s209, 256
        $region32: #{tpu_custom_call.1} parent=27 // pred_fallthru
          _
        %s217 = sand.u32 %s75, 1
        %s218 = scalar_lea.sflag [#allocation7], %s217
        %s219 = sand.u32 %s75, 1
        %s220 = smul.addr %s219, 2
        %s221 = scalar_lea.vmem [#allocation6], %s220
        // Predicated region
        $region33: #{tpu_custom_call.1} parent=27 // pred_check
          %p222 = pneg %p88
        $region34: #{tpu_custom_call.1} parent=27 // pred_check_branch
          %224 = sbr.rel (%p222) target = $region36
        $region35: #{tpu_custom_call.1} parent=27 // pred_region
          %225 = dma.done %s218, 32
        $region36: #{tpu_custom_call.1} parent=27 // pred_fallthru
          _
        %s226 = sand.u32 %s45, 1
        %s227 = scalar_lea.sflag [#allocation5], %s226
        %s228 = sand.u32 %s45, 1
        %s229 = smul.addr %s228, 16
        %s230 = scalar_lea.vmem [#allocation4], %s229
        %p231 = pneg %p58
        %p232 = pneg %p55
        %s233 = sand.u32 %s75, 1
        %s234 = scalar_lea.sflag [#allocation7], %s233
        %s235 = sand.u32 %s75, 1
        %s236 = smul.addr %s235, 2
        %s237 = scalar_lea.vmem [#allocation6], %s236
        %p238 = pneg %p88
        %p239 = pneg %p85
        %p240 = pneg %p114
        %p241 = pneg %p111
        %p242 = scmp.lt.s32.totalorder %s25, 1
        %s243 = scalar_select %p242, %s25, 1
        %s244 = scalar_lea.vmem %s2, %s243
        %p245 = pneg %p140
        %p246 = pneg %p137
        %p247 = scmp.lt.s32.totalorder %s25, 1
        %s248 = scalar_select %p247, %s25, 1
        %s249 = scalar_lea.vmem %s3, %s248
        %s250 = smul.u32 %s25, 4
        %s251 = sadd.s32 %s250, %s26
        %s252 = smul.u32 %s25, 4
        %s253 = sadd.s32 %s252, %s26
        %p254 = scmp.lt.s32.totalorder %s25, 1
        %s255 = scalar_select %p254, %s25, 1
        %s256 = scalar_lea.vmem %s2, %s255
        %p257 = scmp.lt.s32.totalorder %s25, 1
        %s258 = scalar_select %p257, %s25, 1
        %s259 = scalar_lea.vmem %s3, %s258
        %p260 = scmp.eq.s32.totalorder %s26, 0
        // Predicated region
        $region37: #{tpu_custom_call.1} parent=27 // pred_check
          %p261 = pneg %p260
        $region38: #{tpu_custom_call.1} parent=27 // pred_check_branch
          %263 = sbr.rel (%p261) target = $region40
        $region39: #{tpu_custom_call.1} parent=27 // pred_region
          %264 = vst [vmem:[#allocation2] sm:$0x3] 0.0
          %265 = vst [vmem:[#allocation3] sm:$0x3] 0.0
          %vm266 = vcmask 0
          %267 = vst.msk [vmem:[%s256] sm:$0x1] %vm266, 0.0
          %268 = vst.msk [vmem:[%s259] sm:$0x1] %vm266, 0.0
        $region40: #{tpu_custom_call.1} parent=27 // pred_fallthru
          _
        %v269 = vld [vmem:[%s212] sm:$0xff]
        %v270 = vld [vmem:[%s212 + $0x8] sm:$0xff]
        %v271 = vld [vmem:[%s221] sm:$0x3]
        %v272 = vrot.slane %v269, 4
        %v273 = vmax.f32 %v269, %v272
        %v274 = vrot.slane %v273, 2
        %v275 = vmax.f32 %v273, %v274
        %v276 = vrot.slane %v275, 1
        %v277 = vmax.f32 %v275, %v276
        %v278 = vrot.slane %v270, 4
        %v279 = vmax.f32 %v270, %v278
        %v280 = vrot.slane %v279, 2
        %v281 = vmax.f32 %v279, %v280
        %v282 = vrot.slane %v281, 1
        %v283 = vmax.f32 %v281, %v282
        %v284 = vsub.f32 %v269, %v277
        %v285 = vsub.f32 %v270, %v283
        %v286 = vmul.f32 %v284, 1.442695
        %v287 = vpow.pop %v286
        %v288 = vmul.f32 %v285, 1.442695
        %v289 = vpow.pop %v288
        %v290 = vrot.slane %v287, 4
        %v291 = vadd.f32 %v287, %v290
        %v292 = vrot.slane %v291, 2
        %v293 = vadd.f32 %v291, %v292
        %v294 = vrot.slane %v293, 1
        %v295 = vadd.f32 %v293, %v294
        %v296 = vrot.slane %v289, 4
        %v297 = vadd.f32 %v289, %v296
        %v298 = vrot.slane %v297, 2
        %v299 = vadd.f32 %v297, %v298
        %v300 = vrot.slane %v299, 1
        %v301 = vadd.f32 %v299, %v300
        %v302 = vlog2.pop %v295
        %v303 = vmul.f32 %v302, 0.6931472
        %v304 = vlog2.pop %v301
        %v305 = vmul.f32 %v304, 0.6931472
        %v306 = vadd.f32 %v277, %v303
        %v307 = vadd.f32 %v283, %v305
        %v308 = vlaneseq
        %v309 = vshrl.u32 %v308, 7
        %v311 = vunpack.c.l.s4 1966171168
        %v312 = vunpack.c.0.s8 %v311
        %v313 = vlaneseq
        %v314 = vshrl.u32 %v313, 7
        %v315 = vsub.s32 %v312, %v314
        %v316 = vrot.slane %v271, %v315
        %v317 = vcombine.high %v316, %v316
        %v319 = vunpack.c.l.s4 1966171168
        %v320 = vunpack.c.0.s8 %v319
        %v321 = vlaneseq
        %v322 = vshrl.u32 %v321, 7
        %v323 = vsub.s32 %v320, %v322
        %v324 = vrot.slane %v316, %v323
        %v326 = vunpack.c.l.s4 1966171168
        %v327 = vunpack.c.0.s8 %v326
        %v328 = vlaneseq
        %v329 = vshrl.u32 %v328, 7
        %v330 = vsub.s32 %v327, %v329
        %v331 = vrot.slane %v317, %v330
        %v332 = vlaneseq
        %v333 = vshrl.u32 %v332, 7
        %v334 = vsub.s32 0, %v333
        %v335 = vrot.slane %v324, %v334
        %v336 = vlaneseq
        %v337 = vshrl.u32 %v336, 7
        %v338 = vsub.s32 0, %v337
        %v339 = vrot.slane %v331, %v338
        %vm340 = vcmp.eq.s32.totalorder %v309, %v335
        %vm341 = vcmp.eq.s32.totalorder %v309, %v339
        %v342 = vsel %vm340, %v269, 0.0
        %v343 = vsel %vm341, %v270, 0.0
        %v344 = vrot.slane %v342, 4
        %v345 = vadd.f32 %v342, %v344
        %v346 = vrot.slane %v345, 2
        %v347 = vadd.f32 %v345, %v346
        %v348 = vrot.slane %v347, 1
        %v349 = vadd.f32 %v347, %v348
        %v350 = vrot.slane %v343, 4
        %v351 = vadd.f32 %v343, %v350
        %v352 = vrot.slane %v351, 2
        %v353 = vadd.f32 %v351, %v352
        %v354 = vrot.slane %v353, 1
        %v355 = vadd.f32 %v353, %v354
        %vm356 = vcmp.ne.s32.totalorder %v271, 4294967295
        %v357 = vsub.f32 %v306, %v349
        %v358 = vsub.f32 %v307, %v355
        %vm361 = vcmask 1041409
        %v362 = vsel %vm361, %v358, %v357
        %v364 = vsel %vm356, %v362, 0.0
        %v365 = vld [vmem:[#allocation2] sm:$0x3]
        %v366 = vadd.f32 %v365, %v364
        %367 = vst [vmem:[#allocation2] sm:$0x3] %v366
        %v368 = vld [vmem:[#allocation3] sm:$0x3]
        %v369 = vsel %vm356, 1, 0
        %v370 = vcvt.s32.f32 %v369
        %v371 = vadd.f32 %v368, %v370
        %372 = vst [vmem:[#allocation3] sm:$0x3] %v371
        %p373 = scmp.eq.s32.totalorder %s26, 3
        // Predicated region
        $region41: #{tpu_custom_call.1} parent=27 // pred_check
          %p374 = pneg %p373
        $region42: #{tpu_custom_call.1} parent=27 // pred_check_branch
          %376 = sbr.rel (%p374) target = $region44
        $region43: #{tpu_custom_call.1} parent=27 // pred_region
          %v377 = vld [vmem:[#allocation2] sm:$0x3]
          %vm378 = vcmask 1041408
          %v379 = vsel %vm378, %v377, 0.0
          %380 = vadd.xlane.f32.xlu0 %v379
          %v381 = vpop.xlane.xlu0 %380
          %v382 = vrot.slane %v381, 4
          %v383 = vadd.f32 %v381, %v382
          %v384 = vrot.slane %v383, 2
          %v385 = vadd.f32 %v383, %v384
          %v386 = vrot.slane %v385, 1
          %v387 = vadd.f32 %v385, %v386
          %s388 = vtos %v387
          %v389 = vstv %s388
          %vm390 = vcmask 0
          %391 = vst.msk [vmem:[%s256] sm:$0x1] %vm390, %v389
          %v392 = vld [vmem:[#allocation3] sm:$0x3]
          %v393 = vsel %vm378, %v392, 0.0
          %394 = vadd.xlane.f32.xlu0 %v393
          %v395 = vpop.xlane.xlu0 %394
          %v396 = vrot.slane %v395, 4
          %v397 = vadd.f32 %v395, %v396
          %v398 = vrot.slane %v397, 2
          %v399 = vadd.f32 %v397, %v398
          %v400 = vrot.slane %v399, 1
          %v401 = vadd.f32 %v399, %v400
          %s402 = vtos %v401
          %v403 = vstv %s402
          %404 = vst.msk [vmem:[%s259] sm:$0x1] %vm390, %v403
        $region44: #{tpu_custom_call.1} parent=27 // pred_fallthru
          _
        %p405 = scmp.lt.s32.totalorder %s25, 1
        %s406 = scalar_select %p405, %s25, 1
        %s407 = scalar_lea.vmem %s2, %s406
        %p408 = scmp.lt.s32.totalorder %s25, 1
        %s409 = scalar_select %p408, %s25, 1
        %s410 = scalar_lea.vmem %s3, %s409
        // Predicated region
        $region45: #{tpu_custom_call.1} parent=27 // pred_check
          %p411 = pneg %p111
        $region46: #{tpu_custom_call.1} parent=27 // pred_check_branch
          %413 = sbr.rel (%p411) target = $region48
        $region47: #{tpu_custom_call.1} parent=27 // pred_region
          _
        $region48: #{tpu_custom_call.1} parent=27 // pred_fallthru
          _
        // Predicated region
        $region49: #{tpu_custom_call.1} parent=27 // pred_check
          %p414 = pneg %p137
        $region50: #{tpu_custom_call.1} parent=27 // pred_check_branch
          %416 = sbr.rel (%p414) target = $region52
        $region51: #{tpu_custom_call.1} parent=27 // pred_region
          _
        $region52: #{tpu_custom_call.1} parent=27 // pred_fallthru
          _
      $region28: #{tpu_custom_call.1} parent=5 // pred_fallthru
        _
      %p417 = scmp.le.s32.totalorder 2, %s16
      // Predicated region
      $region53: #{tpu_custom_call.1} parent=5 // pred_check
        %p418 = pneg %p417
      $region54: #{tpu_custom_call.1} parent=5 // pred_check_branch
        %420 = sbr.rel (%p418) target = $region56
      $region55: #{tpu_custom_call.1} parent=5 // pred_region
        %s421 = ssub.s32 %s16, 2
        // Predicated region
        $region57: #{tpu_custom_call.1} parent=55 // pred_check
          %p422 = pneg %p117
        $region58: #{tpu_custom_call.1} parent=55 // pred_check_branch
          %424 = sbr.rel (%p422) target = $region60
        $region59: #{tpu_custom_call.1} parent=55 // pred_region
          %p425 = scmp.lt.s32.totalorder %s27, 1
          %s426 = scalar_select %p425, %s27, 1
          %s427 = scalar_lea.vmem %s2, %s426
        $region60: #{tpu_custom_call.1} parent=55 // pred_fallthru
          _
        // Predicated region
        $region61: #{tpu_custom_call.1} parent=55 // pred_check
          %p428 = pneg %p143
        $region62: #{tpu_custom_call.1} parent=55 // pred_check_branch
          %430 = sbr.rel (%p428) target = $region64
        $region63: #{tpu_custom_call.1} parent=55 // pred_region
          %p431 = scmp.lt.s32.totalorder %s27, 1
          %s432 = scalar_select %p431, %s27, 1
          %s433 = scalar_lea.vmem %s3, %s432
        $region64: #{tpu_custom_call.1} parent=55 // pred_fallthru
          _
      $region56: #{tpu_custom_call.1} parent=5 // pred_fallthru
        _
    $region6: #{tpu_custom_call.1} parent=1 // loop_footer
      %s20 = sadd.s32 1, %s16
    $region7: #{tpu_custom_call.1} parent=1 // loop_footer_branch
      %15 = sbr.rel target = $region3
    $region8: #{tpu_custom_call.1} parent=1 // loop_exit
      _
    %434 = vsyncpa [#allocation5], 1
    %s435 = scalar_lea.sflag [#allocation5], 1
    %436 = vsyncpa %s435, 1
    %437 = vsyncpa [#allocation7], 1
    %s438 = scalar_lea.sflag [#allocation7], 1
    %439 = vsyncpa %s438, 1

</llo_original>
